<compile_context>
chip_gen: v5e
topology: v5e:2x2
jax: 0.10.0
libtpu: 0.0.40
codegen_flags: <defaults>
</compile_context>

<pallas_src>
import functools

import jax
import jax.numpy as jnp
from jax.experimental import pallas as pl
from jax.experimental.pallas import tpu as pltpu

TAU = 1.0
GAMMA = 2  # integer exponent -> lowers to multiplies (no pow/log needed)


def _focal_lc_kernel(x_ref, m_ref, t_ref, o_ref, acc_ref, *, n_total, tile_n, gamma):
    i = pl.program_id(0)

    @pl.when(i == 0)
    def _init():
        acc_ref[...] = jnp.zeros_like(acc_ref)

    # logit adjustment; f32 math in-kernel regardless of wire dtype (v5e has no bf16 VPU)
    xm = x_ref[...].astype(jnp.float32) + m_ref[...].astype(jnp.float32)   # [tile_n, C]
    tn, c = xm.shape

    # Fused pass over the class axis on the same live xm tile:
    # row max + exp-sum (stable logsumexp) and the one-hot target gather.
    row_max = jnp.max(xm, axis=-1, keepdims=True)                          # [tn, 1]
    cls_idx = jax.lax.broadcasted_iota(jnp.int32, (tn, c), 1)              # [tn, C]
    onehot = cls_idx == t_ref[...]                                         # [tn, C]
    exp_sum = jnp.sum(jnp.exp(xm - row_max), axis=-1, keepdims=True)       # [tn, 1]
    tgt_logit = jnp.sum(jnp.where(onehot, xm, 0.0), axis=-1, keepdims=True)

    per_ce = row_max + jnp.log(exp_sum) - tgt_logit                        # [tn, 1]

    # mask rows past the true batch size (partial last tile)
    row_idx = i * tile_n + jax.lax.broadcasted_iota(jnp.int32, (tn, 1), 0)
    per_ce = jnp.where(row_idx < n_total, per_ce, 0.0)

    acc_ref[...] += jnp.sum(per_ce, keepdims=True)                         # (1, 1)

    @pl.when(i == pl.num_programs(0) - 1)
    def _finalize():
        ce = acc_ref[...] / jnp.float32(n_total)     # reduction='mean' over the true N
        pt = jnp.exp(-ce)
        o_ref[...] = ((1.0 - pt) ** gamma) * ce


def focal_lc(x, target, cls_num_list, *, tau=TAU, gamma=GAMMA, tile_n=None):
    """x: [N, C] float (any dtype, passed natively), target: [N] int, cls_num_list: [C]."""
    n, c = x.shape

    # parameter setup (glue, mirrors the PyTorch __init__)
    cls_num = jnp.asarray(cls_num_list, dtype=jnp.float32)
    m_list = (tau * jnp.log(cls_num / jnp.sum(cls_num))).reshape(1, c)
    tgt = target.reshape(n, 1).astype(jnp.int32)

    # --- tile sizing: <=1024 rows and ~<=4 MiB f32 working set per tile so the
    # double-buffered pipeline fits v7x's 64 MiB VMEM with headroom. ---
    c_lanes = ((c + 127) // 128) * 128
    if tile_n is None:
        rows_budget = max(8, (4 * 2**20) // (c_lanes * 4))
        tile_n = min(n, 1024, rows_budget)
    tile_n = min(tile_n, n)
    if tile_n < n:
        tile_n = max(8, (tile_n // 8) * 8)     # (8,128) block-shape rule
    num_tiles = pl.cdiv(n, tile_n)

    x_itemsize = jnp.dtype(x.dtype).itemsize
    tile_foot = tile_n * c_lanes * (2 * x_itemsize + 4 * 4)  # dbl-buffered x + f32 temps
    vmem_limit = int(min(64 * 2**20, max(16 * 2**20, tile_foot)))

    kernel = functools.partial(_focal_lc_kernel, n_total=n, tile_n=tile_n, gamma=gamma)

    out = pl.pallas_call(
        kernel,
        out_shape=jax.ShapeDtypeStruct((1, 1), jnp.float32),
        grid=(num_tiles,),
        in_specs=[
            pl.BlockSpec((tile_n, c), lambda i: (i, 0)),   # x, native dtype on the wire
            pl.BlockSpec((1, c), lambda i: (0, 0)),        # m_list (tiny, grid-invariant)
            pl.BlockSpec((tile_n, 1), lambda i: (i, 0)),   # target (lane-sparse but tiny)
        ],
        out_specs=pl.BlockSpec((1, 1), lambda i: (0, 0)),  # resident scalar output
        scratch_shapes=[pltpu.VMEM((1, 1), jnp.float32)],  # running CE sum
        compiler_params=pltpu.CompilerParams(
            dimension_semantics=("arbitrary",),            # batch axis is a reduction
            vmem_limit_bytes=vmem_limit,
        ),
    )(x, m_list, tgt)
    return out[0, 0]


if __name__ == "__main__":
    key = jax.random.PRNGKey(0)
    kx, kt = jax.random.split(key)

    # Small shapes; N deliberately NOT divisible by the tile so the multi-step
    # accumulator and the partial-tile mask are both exercised.
    N, C = 72, 16
    TILE_N = 16   # -> 5 grid steps, last tile half-masked

    # deterministic imbalanced class-frequency list (long-tailed style)
    cls_num_list = [float(2 ** (C - k)) for k in range(C)]

    x = jax.random.normal(kx, (N, C), dtype=jnp.float32)
    target = jax.random.randint(kt, (N,), 0, C, dtype=jnp.int32)

    loss = focal_lc(x, target, cls_num_list, tile_n=TILE_N)
    jax.block_until_ready(loss)

    # pure-JAX reference (same math, no Pallas)
    cls_num = jnp.asarray(cls_num_list, jnp.float32)
    m = TAU * jnp.log(cls_num / jnp.sum(cls_num))
    xm = x.astype(jnp.float32) + m[None, :]
    ce_ref = jnp.mean(jax.nn.logsumexp(xm, axis=-1) - xm[jnp.arange(N), target])
    focal_ref = ((1.0 - jnp.exp(-ce_ref)) ** GAMMA) * ce_ref
    assert jnp.allclose(loss, focal_ref, rtol=1e-4, atol=1e-5), (loss, focal_ref)

    print("KERNEL_OK")
</pallas_src>

<mosaic_0001>
module attributes {stable_mosaic.version = 11 : i64} {
  func.func @_focal_lc_kernel(%arg0: i32, %arg1: memref<16x16xf32, #tpu.memory_space<vmem>>, %arg2: memref<1x16xf32, #tpu.memory_space<vmem>>, %arg3: memref<16x1xi32, #tpu.memory_space<vmem>>, %arg4: memref<1x1xf32, #tpu.memory_space<vmem>>, %arg5: memref<1x1xf32, #tpu.memory_space<vmem>>) attributes {dimension_semantics = [#tpu.dimension_semantics<arbitrary>], iteration_bounds = array<i64: 5>, scalar_prefetch = 0 : i64, scratch_operands = 1 : i64, tpu.core_type = #tpu.core_type<tc>, window_params = [{transform_indices = @transform_0, window_bounds = array<i64: 16, 16>}, {pipeline_mode = #tpu.pipeline_mode<synchronous>, transform_indices = @transform_1, window_bounds = array<i64: 1, 16>}, {transform_indices = @transform_2, window_bounds = array<i64: 16, 1>}, {pipeline_mode = #tpu.pipeline_mode<synchronous>, transform_indices = @transform_3, window_bounds = array<i64: 1, 1>}]} {
    %c0_i32 = arith.constant 0 : i32
    %0 = arith.cmpi eq, %arg0, %c0_i32 : i32
    %1 = arith.extui %0 : i1 to i32
    %c0_i32_0 = arith.constant 0 : i32
    %2 = arith.cmpi ne, %1, %c0_i32_0 : i32
    scf.if %2 {
      %cst_16 = arith.constant 0.000000e+00 : f32
      %44 = vector.broadcast %cst_16 : f32 to vector<1x1xf32>
      %c0_17 = arith.constant 0 : index
      %c0_18 = arith.constant 0 : index
      %45 = vector.load %arg5[%c0_17, %c0_18] : memref<1x1xf32, #tpu.memory_space<vmem>>, vector<1x1xf32>
      tpu.vector_store %arg5[%c0_17, %c0_18], %44 {strides = array<i32>} : memref<1x1xf32, #tpu.memory_space<vmem>>, vector<1x1xf32>,
    } else {
    }
    %c0 = arith.constant 0 : index
    %c0_1 = arith.constant 0 : index
    %3 = vector.load %arg1[%c0, %c0_1] : memref<16x16xf32, #tpu.memory_space<vmem>>, vector<16x16xf32>
    %c0_2 = arith.constant 0 : index
    %c0_3 = arith.constant 0 : index
    %4 = vector.load %arg2[%c0_2, %c0_3] : memref<1x16xf32, #tpu.memory_space<vmem>>, vector<1x16xf32>
    %5 = vector.broadcast %4 : vector<1x16xf32> to vector<16x16xf32>
    %6 = arith.addf %3, %5 : vector<16x16xf32>
    %cst = arith.constant dense<0xFF800000> : vector<16xf32>
    %7 = vector.multi_reduction <maximumf>, %6, %cst [1] : vector<16x16xf32> to vector<16xf32>
    %8 = vector.shape_cast %7 : vector<16xf32> to vector<16x1xf32>
    %9 = tpu.iota {dimensions = array<i32: 1>} : vector<16x16xi32>
    %c0_4 = arith.constant 0 : index
    %c0_5 = arith.constant 0 : index
    %10 = vector.load %arg3[%c0_4, %c0_5] : memref<16x1xi32, #tpu.memory_space<vmem>>, vector<16x1xi32>
    %11 = vector.broadcast %10 : vector<16x1xi32> to vector<16x16xi32>
    %12 = arith.cmpi eq, %9, %11 : vector<16x16xi32>
    %13 = vector.broadcast %8 : vector<16x1xf32> to vector<16x16xf32>
    %14 = arith.subf %6, %13 : vector<16x16xf32>
    %15 = math.exp %14 : vector<16x16xf32>
    %cst_6 = arith.constant dense<0.000000e+00> : vector<16xf32>
    %16 = vector.multi_reduction <add>, %15, %cst_6 [1] : vector<16x16xf32> to vector<16xf32>
    %17 = vector.shape_cast %16 : vector<16xf32> to vector<16x1xf32>
    %cst_7 = arith.constant 0.000000e+00 : f32
    %18 = vector.broadcast %cst_7 : f32 to vector<16x16xf32>
    %19 = arith.select %12, %6, %18 : vector<16x16xi1>, vector<16x16xf32>
    %cst_8 = arith.constant dense<0.000000e+00> : vector<16xf32>
    %20 = vector.multi_reduction <add>, %19, %cst_8 [1] : vector<16x16xf32> to vector<16xf32>
    %21 = vector.shape_cast %20 : vector<16xf32> to vector<16x1xf32>
    %22 = math.log %17 : vector<16x1xf32>
    %23 = arith.addf %8, %22 : vector<16x1xf32>
    %24 = arith.subf %23, %21 : vector<16x1xf32>
    %c16_i32 = arith.constant 16 : i32
    %25 = arith.muli %arg0, %c16_i32 : i32
    %26 = tpu.iota {dimensions = array<i32: 0>} : vector<16x1xi32>
    %27 = vector.broadcast %25 : i32 to vector<16x1xi32>
    %28 = arith.addi %27, %26 : vector<16x1xi32>
    %c72_i32 = arith.constant 72 : i32
    %29 = vector.broadcast %c72_i32 : i32 to vector<16x1xi32>
    %30 = arith.cmpi slt, %28, %29 : vector<16x1xi32>
    %cst_9 = arith.constant 0.000000e+00 : f32
    %31 = vector.broadcast %cst_9 : f32 to vector<16x1xf32>
    %32 = arith.select %30, %24, %31 : vector<16x1xi1>, vector<16x1xf32>
    %c0_10 = arith.constant 0 : index
    %c0_11 = arith.constant 0 : index
    %33 = vector.load %arg5[%c0_10, %c0_11] : memref<1x1xf32, #tpu.memory_space<vmem>>, vector<1x1xf32>
    %34 = vector.shape_cast %32 : vector<16x1xf32> to vector<1x16x1xf32>
    %cst_12 = arith.constant dense<0.000000e+00> : vector<1xf32>
    %35 = vector.multi_reduction <add>, %34, %cst_12 [1, 2] : vector<1x16x1xf32> to vector<1xf32>
    %36 = vector.shape_cast %35 : vector<1xf32> to vector<1x1x1xf32>
    %37 = vector.extract %36[0, 0, 0] : f32 from vector<1x1x1xf32>
    %38 = vector.broadcast %37 : f32 to vector<1x1xf32>
    %39 = arith.addf %33, %38 : vector<1x1xf32>
    %c0_13 = arith.constant 0 : index
    %c0_14 = arith.constant 0 : index
    %40 = vector.load %arg5[%c0_13, %c0_14] : memref<1x1xf32, #tpu.memory_space<vmem>>, vector<1x1xf32>
    tpu.vector_store %arg5[%c0_13, %c0_14], %39 {strides = array<i32>} : memref<1x1xf32, #tpu.memory_space<vmem>>, vector<1x1xf32>,
    %c4_i32 = arith.constant 4 : i32
    %41 = arith.cmpi eq, %arg0, %c4_i32 : i32
    %42 = arith.extui %41 : i1 to i32
    %c0_i32_15 = arith.constant 0 : i32
    %43 = arith.cmpi ne, %42, %c0_i32_15 : i32
    scf.if %43 {
      %c0_16 = arith.constant 0 : index
      %c0_17 = arith.constant 0 : index
      %44 = vector.load %arg5[%c0_16, %c0_17] : memref<1x1xf32, #tpu.memory_space<vmem>>, vector<1x1xf32>
      %cst_18 = arith.constant 7.200000e+01 : f32
      %45 = vector.broadcast %cst_18 : f32 to vector<1x1xf32>
      %46 = arith.divf %44, %45 : vector<1x1xf32>
      %cst_19 = arith.constant 0.000000e+00 : f32
      %47 = vector.broadcast %cst_19 : f32 to vector<1x1xf32>
      %48 = arith.subf %47, %46 : vector<1x1xf32>
      %49 = math.exp %48 : vector<1x1xf32>
      %cst_20 = arith.constant 1.000000e+00 : f32
      %50 = vector.broadcast %cst_20 : f32 to vector<1x1xf32>
      %51 = arith.subf %50, %49 : vector<1x1xf32>
      %52 = arith.mulf %51, %51 : vector<1x1xf32>
      %53 = arith.mulf %52, %46 : vector<1x1xf32>
      %c0_21 = arith.constant 0 : index
      %c0_22 = arith.constant 0 : index
      %54 = vector.load %arg4[%c0_21, %c0_22] : memref<1x1xf32, #tpu.memory_space<vmem>>, vector<1x1xf32>
      tpu.vector_store %arg4[%c0_21, %c0_22], %53 {strides = array<i32>} : memref<1x1xf32, #tpu.memory_space<vmem>>, vector<1x1xf32>,
    } else {
    }
    return
  }
  func.func @transform_0(%arg0: i32) -> (i32, i32) {
    %c0_i32 = arith.constant 0 : i32
    %c0_i32_0 = arith.constant 0 : i32
    return %arg0, %c0_i32 : i32, i32
  }
  func.func @transform_1(%arg0: i32) -> (i32, i32) {
    %c0_i32 = arith.constant 0 : i32
    %c0_i32_0 = arith.constant 0 : i32
    %c0_i32_1 = arith.constant 0 : i32
    return %c0_i32, %c0_i32_0 : i32, i32
  }
  func.func @transform_2(%arg0: i32) -> (i32, i32) {
    %c0_i32 = arith.constant 0 : i32
    %c0_i32_0 = arith.constant 0 : i32
    return %arg0, %c0_i32 : i32, i32
  }
  func.func @transform_3(%arg0: i32) -> (i32, i32) {
    %c0_i32 = arith.constant 0 : i32
    %c0_i32_0 = arith.constant 0 : i32
    %c0_i32_1 = arith.constant 0 : i32
    return %c0_i32, %c0_i32_0 : i32, i32
  }
}

</mosaic_0001>

<llo_original>
// kernel: tpu_custom_call.1
$region0: #{tpu_custom_call.1}
  #allocation0 [shape = 'u32[]', space=smem, size = 0x4, offset = 0x4, fixed_abs, tag = 'smem constant byte address 0x4 - core index']
  #allocation1 [shape = 'u32[72,128]{1,0:T(1,128)}', space=vmem, size = 0x9000, scoped, tag = 'internal scratch']
  #allocation2 [shape = 'f32[1,1]{1,0:T(1,128)}', space=vmem, size = 0x200, scoped, tag = 'scratch operand']
  %s0 = inlined_call_operand.vmem [shape: f32[72,16], index: 0, kind: input, shape index: {}]
  %s1 = inlined_call_operand.vmem [shape: f32[1,16], index: 1, kind: input, shape index: {}]
  %s2 = inlined_call_operand.vmem [shape: s32[72,1], index: 2, kind: input, shape index: {}]
  %s3 = inlined_call_operand.hbm [shape: f32[1,1], index: 3, kind: output, shape index: {}]
  %s4 = sld [smem:[#allocation0]]
  $region53: #{tpu_custom_call.1} parent=0
    _
  %s6 = ssub.s32 1, %s4
  %s7 = scalar_select 0, %s6, %s4
  $region1: #{tpu_custom_call.1} parent=0
    #allocation3 [shape = 'u8[512]{0}', space=vmem, size = 0x400, scoped, tag = 'output window, operand 0, single buffered']
    #allocation4 [shape = 's32[2]{0}', space=sflag, size = 0x8, scoped, tag = 'scoped memory for tpu_custom_call.1']
    %8 = vsyncpa [#allocation4], 0
    loop: start=0, step=1, limit=7
    $region2: #{tpu_custom_call.1} parent=1 // loop_pre_header
      _
    $region3: #{tpu_custom_call.1} parent=1 // loop_header
      %s10 = sphi 0, %s14
      %p11 = scmp.ge.s32.totalorder %s10, 7
      %s20 = sphi 0, %s22
      %s23 = sphi 0, %s20
      %s24 = sphi 0, %s23
      %s40 = sphi 0, %s24
      %s44 = sphi 0, %s44
      %s46 = sphi 0, %s44
      %s47 = sphi 0, %s46
      %s61 = sphi 0, %s47
      %s67 = sphi 0, %s69
      %s70 = sphi 0, %s67
      %s71 = sphi 0, %s70
      %s87 = sphi 0, %s71
      %s91 = sphi 0, %s91
      %s93 = sphi 0, %s91
      %s94 = sphi 0, %s93
      %s108 = sphi 0, %s94
    $region4: #{tpu_custom_call.1} parent=1 // loop_header_branch
      %13 = sbr.rel (%p11) target = $region8
    $region5: #{tpu_custom_call.1} parent=1 // loop_body
      %s15 = ssub.s32 %s10, 1
      %s16 = ssub.s32 %s10, 2
      %s17 = sadd.s32 %s10, 1
      %s18 = ssub.s32 %s10, %s17
      %p19 = scmp.eq.s32.totalorder %s18, 0
      %s21 = sadd.s32 %s20, 1
      %s22 = scalar_select %p19, %s20, %s21
      %p25 = pneg %p19
      %p26 = scmp.eq.s32.totalorder %s10, 4
      %p27 = por %p25, %p26
      %p28 = scmp.ne.s32.totalorder %s20, %s23
      %p29 = scmp.eq.s32.totalorder %s10, 0
      %p30 = por %p28, %p29
      %p31 = scmp.ne.s32.totalorder %s20, %s23
      %p32 = scmp.eq.s32.totalorder %s15, 4
      %p33 = por %p31, %p32
      %p34 = scmp.ne.s32.totalorder %s23, %s24
      %p35 = scmp.eq.s32.totalorder %s15, 0
      %p36 = por %p34, %p35
      %p37 = scmp.ne.s32.totalorder %s23, %s24
      %p38 = scmp.eq.s32.totalorder %s16, 4
      %p39 = por %p37, %p38
      %p41 = scmp.ne.s32.totalorder %s24, %s40
      %p42 = scmp.eq.s32.totalorder %s16, 0
      %p43 = por %p41, %p42
      %s45 = sadd.s32 %s44, 1
      %p48 = scmp.eq.s32.totalorder %s10, 4
      %p49 = scmp.ne.s32.totalorder %s44, %s46
      %p50 = scmp.eq.s32.totalorder %s10, 0
      %p51 = por %p49, %p50
      %p52 = scmp.ne.s32.totalorder %s44, %s46
      %p53 = scmp.eq.s32.totalorder %s15, 4
      %p54 = por %p52, %p53
      %p55 = scmp.ne.s32.totalorder %s46, %s47
      %p56 = scmp.eq.s32.totalorder %s15, 0
      %p57 = por %p55, %p56
      %p58 = scmp.ne.s32.totalorder %s46, %s47
      %p59 = scmp.eq.s32.totalorder %s16, 4
      %p60 = por %p58, %p59
      %p62 = scmp.ne.s32.totalorder %s47, %s61
      %p63 = scmp.eq.s32.totalorder %s16, 0
      %p64 = por %p62, %p63
      %s65 = ssub.s32 %s10, %s17
      %p66 = scmp.eq.s32.totalorder %s65, 0
      %s68 = sadd.s32 %s67, 1
      %s69 = scalar_select %p66, %s67, %s68
      %p72 = pneg %p66
      %p73 = scmp.eq.s32.totalorder %s10, 4
      %p74 = por %p72, %p73
      %p75 = scmp.ne.s32.totalorder %s67, %s70
      %p76 = scmp.eq.s32.totalorder %s10, 0
      %p77 = por %p75, %p76
      %p78 = scmp.ne.s32.totalorder %s67, %s70
      %p79 = scmp.eq.s32.totalorder %s15, 4
      %p80 = por %p78, %p79
      %p81 = scmp.ne.s32.totalorder %s70, %s71
      %p82 = scmp.eq.s32.totalorder %s15, 0
      %p83 = por %p81, %p82
      %p84 = scmp.ne.s32.totalorder %s70, %s71
      %p85 = scmp.eq.s32.totalorder %s16, 4
      %p86 = por %p84, %p85
      %p88 = scmp.ne.s32.totalorder %s71, %s87
      %p89 = scmp.eq.s32.totalorder %s16, 0
      %p90 = por %p88, %p89
      %s92 = sadd.s32 %s91, 1
      %p95 = scmp.eq.s32.totalorder %s10, 4
      %p96 = scmp.ne.s32.totalorder %s91, %s93
      %p97 = scmp.eq.s32.totalorder %s10, 0
      %p98 = por %p96, %p97
      %p99 = scmp.ne.s32.totalorder %s91, %s93
      %p100 = scmp.eq.s32.totalorder %s15, 4
      %p101 = por %p99, %p100
      %p102 = scmp.ne.s32.totalorder %s93, %s94
      %p103 = scmp.eq.s32.totalorder %s15, 0
      %p104 = por %p102, %p103
      %p105 = scmp.ne.s32.totalorder %s93, %s94
      %p106 = scmp.eq.s32.totalorder %s16, 4
      %p107 = por %p105, %p106
      %p109 = scmp.ne.s32.totalorder %s94, %s108
      %p110 = scmp.eq.s32.totalorder %s16, 0
      %p111 = por %p109, %p110
      %p112 = scmp.le.s32.totalorder 1, %s10
      %p113 = scmp.lt.s32.totalorder %s10, 6
      %p114 = pnand %p112, %p113
      %p115 = pneg %p114
      // Predicated region
      $region9: #{tpu_custom_call.1} parent=5 // pred_check
        _
      $region10: #{tpu_custom_call.1} parent=5 // pred_check_branch
        %117 = sbr.rel (%p114) target = $region12
      $region11: #{tpu_custom_call.1} parent=5 // pred_region
        %s118 = ssub.s32 %s10, 1
        // Predicated region
        $region13: #{tpu_custom_call.1} parent=11 // pred_check
          %p119 = pneg %p57
        $region14: #{tpu_custom_call.1} parent=11 // pred_check_branch
          %121 = sbr.rel (%p119) target = $region16
        $region15: #{tpu_custom_call.1} parent=11 // pred_region
          _
        $region16: #{tpu_custom_call.1} parent=11 // pred_fallthru
          _
      $region12: #{tpu_custom_call.1} parent=5 // pred_fallthru
        _
      %p122 = scmp.lt.s32.totalorder %s10, 5
      // Predicated region
      $region17: #{tpu_custom_call.1} parent=5 // pred_check
        %p123 = pneg %p122
      $region18: #{tpu_custom_call.1} parent=5 // pred_check_branch
        %125 = sbr.rel (%p123) target = $region20
      $region19: #{tpu_custom_call.1} parent=5 // pred_region
        // Predicated region
        $region21: #{tpu_custom_call.1} parent=19 // pred_check
          %p126 = pneg %p30
        $region22: #{tpu_custom_call.1} parent=19 // pred_check_branch
          %128 = sbr.rel (%p126) target = $region24
        $region23: #{tpu_custom_call.1} parent=19 // pred_region
          %s129 = smul.u32 2, %s10
          %s130 = ssub.s32 9, %s129
          %p131 = scmp.lt.s32.totalorder %s130, 2
          %s132 = scalar_select %p131, %s130, 2
          %s133 = smul.u32 8, %s132
          %p134 = scmp.lt.s32.totalorder %s129, 8
          %s135 = scalar_select %p134, %s129, 8
          %s136 = smul.addr %s135, 8
          %s137 = scalar_lea.vmem %s0, %s136
          %s138 = smul.u32 2, %s10
          %s139 = ssub.s32 9, %s138
          %p140 = scmp.lt.s32.totalorder %s139, 2
          %s141 = scalar_select %p140, %s139, 2
          %s142 = smul.u32 8, %s141
        $region24: #{tpu_custom_call.1} parent=19 // pred_fallthru
          _
        // Predicated region
        $region25: #{tpu_custom_call.1} parent=19 // pred_check
          %p143 = pneg %p77
        $region26: #{tpu_custom_call.1} parent=19 // pred_check_branch
          %145 = sbr.rel (%p143) target = $region28
        $region27: #{tpu_custom_call.1} parent=19 // pred_region
          %s146 = smul.u32 2, %s10
          %s147 = ssub.s32 9, %s146
          %p148 = scmp.lt.s32.totalorder %s147, 2
          %s149 = scalar_select %p148, %s147, 2
          %s150 = smul.u32 8, %s149
          %p151 = scmp.lt.s32.totalorder %s146, 8
          %s152 = scalar_select %p151, %s146, 8
          %s153 = smul.addr %s152, 8
          %s154 = scalar_lea.vmem %s2, %s153
          %s155 = smul.u32 2, %s10
          %s156 = ssub.s32 9, %s155
          %p157 = scmp.lt.s32.totalorder %s156, 2
          %s158 = scalar_select %p157, %s156, 2
          %s159 = smul.u32 8, %s158
        $region28: #{tpu_custom_call.1} parent=19 // pred_fallthru
          _
      $region20: #{tpu_custom_call.1} parent=5 // pred_fallthru
        _
      %p160 = scmp.le.s32.totalorder 1, %s10
      %p161 = scmp.lt.s32.totalorder %s10, 6
      %p162 = pnand %p160, %p161
      %p163 = pneg %p162
      // Predicated region
      $region29: #{tpu_custom_call.1} parent=5 // pred_check
        _
      $region30: #{tpu_custom_call.1} parent=5 // pred_check_branch
        %165 = sbr.rel (%p162) target = $region32
      $region31: #{tpu_custom_call.1} parent=5 // pred_region
        %s166 = ssub.s32 %s10, 1
        %s167 = smul.u32 2, %s15
        %s168 = ssub.s32 9, %s167
        %p169 = scmp.lt.s32.totalorder %s168, 2
        %s170 = scalar_select %p169, %s168, 2
        %s171 = smul.u32 8, %s170
        %p172 = scmp.lt.s32.totalorder %s167, 8
        %s173 = scalar_select %p172, %s167, 8
        %s174 = smul.addr %s173, 8
        %s175 = scalar_lea.vmem %s0, %s174
        %p176 = pneg %p36
        %p177 = pneg %p33
        %p178 = pneg %p57
        %p179 = pneg %p54
        %s180 = smul.u32 2, %s15
        %s181 = ssub.s32 9, %s180
        %p182 = scmp.lt.s32.totalorder %s181, 2
        %s183 = scalar_select %p182, %s181, 2
        %s184 = smul.u32 8, %s183
        %p185 = scmp.lt.s32.totalorder %s180, 8
        %s186 = scalar_select %p185, %s180, 8
        %s187 = smul.addr %s186, 8
        %s188 = scalar_lea.vmem %s2, %s187
        %p189 = pneg %p83
        %p190 = pneg %p80
        %p191 = pneg %p104
        %p192 = pneg %p101
        %s193 = smul.u32 2, %s15
        %s194 = ssub.s32 9, %s193
        %p195 = scmp.lt.s32.totalorder %s194, 2
        %s196 = scalar_select %p195, %s194, 2
        %s197 = smul.u32 8, %s196
        %p198 = scmp.lt.s32.totalorder %s193, 8
        %s199 = scalar_select %p198, %s193, 8
        %s200 = smul.addr %s199, 8
        %s201 = scalar_lea.vmem %s0, %s200
        %s202 = smul.u32 2, %s15
        %s203 = ssub.s32 9, %s202
        %p204 = scmp.lt.s32.totalorder %s203, 2
        %s205 = scalar_select %p204, %s203, 2
        %s206 = smul.u32 8, %s205
        %s207 = smul.u32 2, %s15
        %s208 = ssub.s32 9, %s207
        %p209 = scmp.lt.s32.totalorder %s208, 2
        %s210 = scalar_select %p209, %s208, 2
        %s211 = smul.u32 8, %s210
        %p212 = scmp.lt.s32.totalorder %s207, 8
        %s213 = scalar_select %p212, %s207, 8
        %s214 = smul.addr %s213, 8
        %s215 = scalar_lea.vmem %s2, %s214
        %s216 = smul.u32 2, %s15
        %s217 = ssub.s32 9, %s216
        %p218 = scmp.lt.s32.totalorder %s217, 2
        %s219 = scalar_select %p218, %s217, 2
        %s220 = smul.u32 8, %s219
        %p221 = scmp.eq.s32.totalorder %s15, 0
        // Predicated region
        $region33: #{tpu_custom_call.1} parent=31 // pred_check
          %p222 = pneg %p221
        $region34: #{tpu_custom_call.1} parent=31 // pred_check_branch
          %224 = sbr.rel (%p222) target = $region36
        $region35: #{tpu_custom_call.1} parent=31 // pred_region
          %vm225 = vcmask 0
          %226 = vst.msk [vmem:[#allocation2] sm:$0x1] %vm225, 0.0
        $region36: #{tpu_custom_call.1} parent=31 // pred_fallthru
          _
        %v227 = vld [vmem:[%s201] sm:$0xff]
        %v228 = vld [vmem:[%s201 + $0x8] sm:$0xff]
        %v229 = vld [vmem:[%s1] sm:$0x1]
        %v231 = vperm.slane %v229, 0
        %v233 = vadd.f32 %v227, %v231
        %v234 = vadd.f32 %v228, %v231
        %vm235 = vcmask 130048
        %v236 = vsel %vm235, %v233, -inf
        %237 = vmax.xlane.f32.xlu0 %v236
        %v238 = vpop.xlane.xlu0 %237
        %v239 = vsel %vm235, %v234, -inf
        %240 = vmax.xlane.f32.xlu0 %v239
        %v241 = vpop.xlane.xlu0 %240
        %v242 = vlaneseq
        %v243 = vand.u32 %v242, 127
        %v244 = vld [vmem:[%s215] sm:$0xff]
        %v245 = vld [vmem:[%s215 + $0x8] sm:$0xff]
        %246 = vset.pattern.permute.xlu0 0
        %247 = vperm.xlu0 %246, %v244
        %v248 = vpop.permute.xlu0 %247
        %249 = vset.pattern.permute.xlu0 0
        %250 = vperm.xlu0 %249, %v245
        %v251 = vpop.permute.xlu0 %250
        %vm252 = vcmp.eq.s32.totalorder %v243, %v248
        %vm253 = vcmp.eq.s32.totalorder %v243, %v251
        %v254 = vsub.f32 %v233, %v238
        %v255 = vsub.f32 %v234, %v241
        %v256 = vmul.f32 %v254, 1.442695
        %v257 = vpow.pop %v256
        %v258 = vmul.f32 %v255, 1.442695
        %v259 = vpow.pop %v258
        %v260 = vsel %vm235, %v257, 0.0
        %261 = vadd.xlane.f32.xlu0 %v260
        %v262 = vpop.xlane.xlu0 %261
        %v263 = vsel %vm235, %v259, 0.0
        %264 = vadd.xlane.f32.xlu0 %v263
        %v265 = vpop.xlane.xlu0 %264
        %v266 = vsel %vm252, %v233, 0.0
        %v267 = vsel %vm253, %v234, 0.0
        %v268 = vsel %vm235, %v266, 0.0
        %269 = vadd.xlane.f32.xlu0 %v268
        %v270 = vpop.xlane.xlu0 %269
        %v271 = vsel %vm235, %v267, 0.0
        %272 = vadd.xlane.f32.xlu0 %v271
        %v273 = vpop.xlane.xlu0 %272
        %v274 = vlog2.pop %v262
        %v275 = vmul.f32 %v274, 0.6931472
        %v276 = vlog2.pop %v265
        %v277 = vmul.f32 %v276, 0.6931472
        %v278 = vadd.f32 %v238, %v275
        %v279 = vadd.f32 %v241, %v277
        %v280 = vsub.f32 %v278, %v270
        %v281 = vsub.f32 %v279, %v273
        %s282 = smul.u32 %s15, 16
        %v283 = vlaneseq
        %v284 = vshrl.u32 %v283, 7
        %v285 = vadd.s32 %v284, 8
        %v286 = vstv %s282
        %v287 = vadd.s32 %v286, %v284
        %v288 = vadd.s32 %v286, %v285
        %vm289 = vcmp.lt.s32.totalorder %v287, 72
        %vm290 = vcmp.lt.s32.totalorder %v288, 72
        %v291 = vsel %vm289, %v280, 0.0
        %v292 = vsel %vm290, %v281, 0.0
        %v293 = vld [vmem:[#allocation2] sm:$0x1]
        %vm294 = vcmask 7168
        %v295 = vsel %vm294, %v291, 0.0
        %v296 = vsel %vm294, %v292, 0.0
        %v297 = vadd.f32 %v295, %v296
        %298 = vadd.xlane.f32.xlu0 %v297
        %v299 = vpop.xlane.xlu0 %298
        %v300 = vrot.slane %v299, 4
        %v301 = vadd.f32 %v299, %v300
        %v302 = vrot.slane %v301, 2
        %v303 = vadd.f32 %v301, %v302
        %v304 = vrot.slane %v303, 1
        %v305 = vadd.f32 %v303, %v304
        %s306 = vtos %v305
        %v307 = vstv %s306
        %v308 = vadd.f32 %v293, %v307
        %vm309 = vcmask 0
        %310 = vst.msk [vmem:[#allocation2] sm:$0x1] %vm309, %v308
        %p311 = scmp.eq.s32.totalorder %s15, 4
        // Predicated region
        $region37: #{tpu_custom_call.1} parent=31 // pred_check
          %p312 = pneg %p311
        $region38: #{tpu_custom_call.1} parent=31 // pred_check_branch
          %314 = sbr.rel (%p312) target = $region40
        $region39: #{tpu_custom_call.1} parent=31 // pred_region
          %v315 = vld [vmem:[#allocation2] sm:$0x1]
          %v316 = vrcp.pop 72.0
          %v317 = vmul.f32 72.0, %v316
          %v318 = vsub.f32 1.0, %v317
          %v319 = vmul.f32 %v316, %v318
          %v320 = vadd.f32 %v316, %v319
          %vm321 = vweird.f32 %v316
          %v322 = vsel %vm321, %v316, %v320
          %v323 = vmul.f32 %v315, %v322
          %v324 = vsub.f32 0.0, %v323
          %v325 = vmul.f32 %v324, 1.442695
          %v326 = vpow.pop %v325
          %v327 = vsub.f32 1.0, %v326
          %v328 = vmul.f32 %v327, %v327
          %v329 = vmul.f32 %v328, %v323
          %330 = vst.msk [vmem:[#allocation3] sm:$0x1] %vm309, %v329
        $region40: #{tpu_custom_call.1} parent=31 // pred_fallthru
          _
        // Predicated region
        $region41: #{tpu_custom_call.1} parent=31 // pred_check
          %p331 = pneg %p101
        $region42: #{tpu_custom_call.1} parent=31 // pred_check_branch
          %333 = sbr.rel (%p331) target = $region44
        $region43: #{tpu_custom_call.1} parent=31 // pred_region
          %335 = vsyncadd [#allocation4], 0
          %s337 = sshll.u32 [#allocation3], 4
          %s338 = int_to_ptr.vmem [resolvable:$true] %s337
          %s339 = sshll.u32 %s3, 4
          %s340 = int_to_ptr.hbm [resolvable:$true] %s339
          %342 = dma.vmem_to_hbm [thread:$0]  %s338, 16, %s340, [#allocation4]
        $region44: #{tpu_custom_call.1} parent=31 // pred_fallthru
          _
        // Predicated region
        $region45: #{tpu_custom_call.1} parent=31 // pred_check
          %p343 = pneg %p101
        $region46: #{tpu_custom_call.1} parent=31 // pred_check_branch
          %345 = sbr.rel (%p343) target = $region48
        $region47: #{tpu_custom_call.1} parent=31 // pred_region
          %347 = dma.done [#allocation4], 16
        $region48: #{tpu_custom_call.1} parent=31 // pred_fallthru
          _
      $region32: #{tpu_custom_call.1} parent=5 // pred_fallthru
        _
      %p348 = scmp.le.s32.totalorder 2, %s10
      // Predicated region
      $region49: #{tpu_custom_call.1} parent=5 // pred_check
        %p349 = pneg %p348
      $region50: #{tpu_custom_call.1} parent=5 // pred_check_branch
        %351 = sbr.rel (%p349) target = $region52
      $region51: #{tpu_custom_call.1} parent=5 // pred_region
        %s352 = ssub.s32 %s10, 2
      $region52: #{tpu_custom_call.1} parent=5 // pred_fallthru
        _
    $region6: #{tpu_custom_call.1} parent=1 // loop_footer
      %s14 = sadd.s32 1, %s10
    $region7: #{tpu_custom_call.1} parent=1 // loop_footer_branch
      %9 = sbr.rel target = $region3
    $region8: #{tpu_custom_call.1} parent=1 // loop_exit
      _
    %353 = vsyncpa [#allocation4], 1
    %s354 = scalar_lea.sflag [#allocation4], 1
    %355 = vsyncpa %s354, 1

</llo_original>
